<compile_context>
chip_gen: v6e
topology: v6e:2x2x1
jax: 0.10.0
libtpu: 0.0.40
codegen_flags: <defaults>
</compile_context>

<pallas_src>
import functools

import jax
import jax.numpy as jnp
from jax.experimental import pallas as pl
from jax.experimental.pallas import tpu as pltpu


def _softplus(x):
    # PyTorch Softplus(beta=1, threshold=20): linear for x > 20.
    return jnp.where(x > 20.0, x, jnp.log1p(jnp.exp(jnp.minimum(x, 20.0))))


def _round_up(x, m):
    return (x + m - 1) // m * m


def _ml3_smnist_kernel(yin_ref, ytg_ref,
                       w1_ref, b1_ref,
                       w2_ref, b2_ref,
                       w3_ref, b3_ref,
                       out_ref, acc_ref,
                       *, b_true, b_tile, n_inner, mask_needed):
    p = pl.program_id(0)            # partial-sum index (parallel across cores)
    i = pl.program_id(1)            # reduction step within this partial sum
    t = p * n_inner + i             # global batch-tile index

    @pl.when(i == 0)
    def _():
        acc_ref[...] = jnp.zeros_like(acc_ref)

    # |y_in - y_target| on the channel-folded (b_tile, 2*D) layout; upcast to
    # f32 right after load (inputs may be streamed as bf16 on v6e/v7x).
    y = jnp.abs(yin_ref[...].astype(jnp.float32) -
                ytg_ref[...].astype(jnp.float32))                 # (b_tile, 2D)

    # fc1 + ReLU.  w1_ref is the row-duplicated, pre-transposed fc1 weight, so
    # this single MXU matmul also performs the channel-sum reduction.
    h1 = jnp.dot(y, w1_ref[...], preferred_element_type=jnp.float32) + b1_ref[...]
    h1 = jnp.maximum(h1, 0.0)                                     # (b_tile, H1)

    # fc2 + ReLU (weights pre-transposed to (in, out): no in-kernel .T).
    h2 = jnp.dot(h1, w2_ref[...], preferred_element_type=jnp.float32) + b2_ref[...]
    h2 = jnp.maximum(h2, 0.0)                                     # (b_tile, H2)

    # Output head: N=1 matmul replaced with VPU multiply + row (lane) reduce.
    o = jnp.sum(h2 * w3_ref[...], axis=1, keepdims=True) + b3_ref[...]
    o = _softplus(o)                                              # (b_tile, 1)

    if mask_needed:
        # Interior tiles: plain accumulate (no iota/compare/select).
        @pl.when((t + 1) * b_tile <= b_true)
        def _():
            acc_ref[...] += jnp.sum(o, keepdims=True)

        # Ragged edge tile / phantom tiles: mask rows >= b_true so garbage
        # rows never reach the mean (select discards their NaN/Inf branch).
        @pl.when((t + 1) * b_tile > b_true)
        def _():
            row = jax.lax.broadcasted_iota(jnp.int32, o.shape, 0) + t * b_tile
            acc_ref[...] += jnp.sum(jnp.where(row < b_true, o, 0.0),
                                    keepdims=True)
    else:
        acc_ref[...] += jnp.sum(o, keepdims=True)

    @pl.when(i == n_inner - 1)
    def _():
        out_ref[0] = acc_ref[...]          # write this core's partial sum


@functools.partial(jax.jit, static_argnames=("b_tile", "input_dtype"))
def ml3_smnist_forward(y_in, y_target, params, b_tile=None,
                       input_dtype=jnp.float32):
    w1, b1, w2, b2, w3, b3 = params
    B, D, two = y_in.shape
    assert two == 2
    H1 = w1.shape[0]
    H2 = w2.shape[0]
    twoD = 2 * D

    # NOTE: for tiny B the fixed pallas_call overhead dominates the ~3K
    # FLOPs/row of work; batch many problem instances per call when possible.
    if b_tile is None:
        b_tile = min(2048, _round_up(B, 8))
    num_tiles = -(-B // b_tile)                  # cdiv
    n_outer = 2 if num_tiles >= 2 else 1         # v7x: one partial sum per TC
    n_inner = -(-num_tiles // n_outer)
    # Mask needed iff the last real tile is ragged or a phantom tile exists.
    mask_needed = (b_tile * n_outer * n_inner != B)

    # Channel axis folded into the feature axis: free, contiguous reshape
    # (no moveaxis, no pad -> no extra HBM round trips on the hot inputs).
    yin = y_in.reshape(B, twoD).astype(input_dtype)
    ytg = y_target.reshape(B, twoD).astype(input_dtype)

    # fc1 weight: transpose to (in, out) and duplicate each row per channel so
    # the flat |diff| @ w1_dup equals (sum_c |diff|_c) @ w1.T.
    w1_dup = jnp.repeat(w1.T, 2, axis=0)         # (2D, H1)
    w2t = w2.T                                   # (H1, H2)

    def in_idx(p, i):
        # Clamp phantom tiles (present only when the tile count was rounded up
        # to fill the 2-wide outer axis) onto the last real tile; their rows
        # are fully masked in the kernel.
        return (jnp.minimum(p * n_inner + i, num_tiles - 1), 0)

    const = lambda shape: pl.BlockSpec(shape, lambda p, i: (0,) * len(shape))

    kernel = functools.partial(_ml3_smnist_kernel, b_true=B, b_tile=b_tile,
                               n_inner=n_inner, mask_needed=mask_needed)

    partial_sums = pl.pallas_call(
        kernel,
        out_shape=jax.ShapeDtypeStruct((n_outer, 1, 1), jnp.float32),
        grid=(n_outer, n_inner),
        in_specs=[
            pl.BlockSpec((b_tile, twoD), in_idx),   # y_in   (channels folded)
            pl.BlockSpec((b_tile, twoD), in_idx),   # y_target
            const((twoD, H1)),   # fc1.weight^T, rows duplicated per channel
            const((1, H1)),      # fc1.bias
            const((H1, H2)),     # fc2.weight^T  (in, out)
            const((1, H2)),      # fc2.bias
            const((1, H2)),      # output.weight row
            const((1, 1)),       # output.bias
        ],
        out_specs=pl.BlockSpec((1, 1, 1), lambda p, i: (p, 0, 0)),
        scratch_shapes=[pltpu.VMEM((1, 1), jnp.float32)],
        compiler_params=pltpu.CompilerParams(
            # Outer axis = independent partial sums (megacore-parallel on v7x);
            # inner axis carries the accumulator (reduction).
            dimension_semantics=("parallel", "arbitrary"),
            vmem_limit_bytes=32 * 1024 * 1024,
        ),
    )(yin, ytg, w1_dup, b1, w2t, b2, w3, b3)

    # Final tiny reduction over the per-core partial sums; mean over true B.
    return jnp.sum(partial_sums) / B


def init_params(key, in_dim, hidden_dim):
    """Deterministic init mirroring weight_init() + reset():
       - fc1/fc2: xavier_uniform weights, bias = 0.001
       - output:  uniform(0, 1) weights, bias = 0.001
    """
    k1, k2, k3 = jax.random.split(key, 3)

    def xavier(k, fan_out, fan_in):
        bound = (6.0 / (fan_in + fan_out)) ** 0.5
        return jax.random.uniform(k, (fan_out, fan_in), jnp.float32, -bound, bound)

    h1, h2 = hidden_dim
    w1 = xavier(k1, h1, in_dim)
    b1 = jnp.full((1, h1), 0.001, jnp.float32)
    w2 = xavier(k2, h2, h1)
    b2 = jnp.full((1, h2), 0.001, jnp.float32)
    w3 = jax.random.uniform(k3, (1, h2), jnp.float32, 0.0, 1.0)
    b3 = jnp.full((1, 1), 0.001, jnp.float32)
    return (w1, b1, w2, b2, w3, b3)


def _reference(y_in, y_target, params):
    # Pure-JAX reference for a sanity check.
    w1, b1, w2, b2, w3, b3 = params
    y = jnp.sum(jnp.abs(y_in - y_target), axis=2)
    y = jax.nn.relu(y @ w1.T + b1)
    y = jax.nn.relu(y @ w2.T + b2)
    y = _softplus(y @ w3.T + b3)
    return jnp.mean(y)


if __name__ == "__main__":
    key = jax.random.PRNGKey(0)
    kx, kt, kp = jax.random.split(key, 3)

    in_dim, hidden_dim = 16, (32, 32)
    params = init_params(kp, in_dim, hidden_dim)

    # --- Test 1: small batch, single tile (block == full array), f32. -------
    B1 = 8
    y_in = jax.random.normal(kx, (B1, in_dim, 2), jnp.float32)
    y_tg = jax.random.normal(kt, (B1, in_dim, 2), jnp.float32)
    loss1 = ml3_smnist_forward(y_in, y_tg, params)
    jax.block_until_ready(loss1)
    ref1 = _reference(y_in, y_tg, params)
    assert jnp.allclose(loss1, ref1, rtol=1e-4, atol=1e-4), (loss1, ref1)

    # --- Test 2: ragged last tile + odd tile count (phantom tile), 2-D grid.
    B2 = 40
    kx2, kt2 = jax.random.split(kx)
    y_in2 = jax.random.normal(kx2, (B2, in_dim, 2), jnp.float32)
    y_tg2 = jax.random.normal(kt2, (B2, in_dim, 2), jnp.float32)
    loss2 = ml3_smnist_forward(y_in2, y_tg2, params, b_tile=16)
    jax.block_until_ready(loss2)
    ref2 = _reference(y_in2, y_tg2, params)
    assert jnp.allclose(loss2, ref2, rtol=1e-4, atol=1e-4), (loss2, ref2)

    # --- Test 3: bf16 input streaming (v6e/v7x bandwidth lever). ------------
    loss3 = ml3_smnist_forward(y_in2, y_tg2, params, b_tile=16,
                               input_dtype=jnp.bfloat16)
    jax.block_until_ready(loss3)
    assert jnp.allclose(loss3, ref2, rtol=5e-2, atol=5e-2), (loss3, ref2)

    print("KERNEL_OK")
</pallas_src>

<mosaic_0001>
module attributes {stable_mosaic.version = 11 : i64} {
  func.func @_ml3_smnist_kernel(%arg0: i32, %arg1: i32, %arg2: memref<8x32xf32, #tpu.memory_space<vmem>>, %arg3: memref<8x32xf32, #tpu.memory_space<vmem>>, %arg4: memref<32x32xf32, #tpu.memory_space<vmem>>, %arg5: memref<1x32xf32, #tpu.memory_space<vmem>>, %arg6: memref<32x32xf32, #tpu.memory_space<vmem>>, %arg7: memref<1x32xf32, #tpu.memory_space<vmem>>, %arg8: memref<1x32xf32, #tpu.memory_space<vmem>>, %arg9: memref<1x1xf32, #tpu.memory_space<vmem>>, %arg10: memref<1x1x1xf32, #tpu.memory_space<vmem>>, %arg11: memref<1x1xf32, #tpu.memory_space<vmem>>) attributes {dimension_semantics = [#tpu.dimension_semantics<parallel>, #tpu.dimension_semantics<arbitrary>], iteration_bounds = array<i64: 1, 1>, scalar_prefetch = 0 : i64, scratch_operands = 1 : i64, tpu.core_type = #tpu.core_type<tc>, window_params = [{transform_indices = @transform_0, window_bounds = array<i64: 8, 32>}, {transform_indices = @transform_1, window_bounds = array<i64: 8, 32>}, {pipeline_mode = #tpu.pipeline_mode<synchronous>, transform_indices = @transform_2, window_bounds = array<i64: 32, 32>}, {pipeline_mode = #tpu.pipeline_mode<synchronous>, transform_indices = @transform_3, window_bounds = array<i64: 1, 32>}, {pipeline_mode = #tpu.pipeline_mode<synchronous>, transform_indices = @transform_4, window_bounds = array<i64: 32, 32>}, {pipeline_mode = #tpu.pipeline_mode<synchronous>, transform_indices = @transform_5, window_bounds = array<i64: 1, 32>}, {pipeline_mode = #tpu.pipeline_mode<synchronous>, transform_indices = @transform_6, window_bounds = array<i64: 1, 32>}, {pipeline_mode = #tpu.pipeline_mode<synchronous>, transform_indices = @transform_7, window_bounds = array<i64: 1, 1>}, {transform_indices = @transform_8, window_bounds = array<i64: 1, 1, 1>}]} {
    %c0_i32 = arith.constant 0 : i32
    %0 = arith.cmpi eq, %arg1, %c0_i32 : i32
    %1 = arith.extui %0 : i1 to i32
    %c0_i32_0 = arith.constant 0 : i32
    %2 = arith.cmpi ne, %1, %c0_i32_0 : i32
    scf.if %2 {
      %cst_29 = arith.constant 0.000000e+00 : f32
      %47 = vector.broadcast %cst_29 : f32 to vector<1x1xf32>
      %c0_30 = arith.constant 0 : index
      %c0_31 = arith.constant 0 : index
      %48 = vector.load %arg11[%c0_30, %c0_31] : memref<1x1xf32, #tpu.memory_space<vmem>>, vector<1x1xf32>
      tpu.vector_store %arg11[%c0_30, %c0_31], %47 {strides = array<i32>} : memref<1x1xf32, #tpu.memory_space<vmem>>, vector<1x1xf32>,
    } else {
    }
    %c0 = arith.constant 0 : index
    %c0_1 = arith.constant 0 : index
    %3 = vector.load %arg2[%c0, %c0_1] : memref<8x32xf32, #tpu.memory_space<vmem>>, vector<8x32xf32>
    %c0_2 = arith.constant 0 : index
    %c0_3 = arith.constant 0 : index
    %4 = vector.load %arg3[%c0_2, %c0_3] : memref<8x32xf32, #tpu.memory_space<vmem>>, vector<8x32xf32>
    %5 = arith.subf %3, %4 : vector<8x32xf32>
    %6 = math.absf %5 : vector<8x32xf32>
    %c0_4 = arith.constant 0 : index
    %c0_5 = arith.constant 0 : index
    %7 = vector.load %arg4[%c0_4, %c0_5] : memref<32x32xf32, #tpu.memory_space<vmem>>, vector<32x32xf32>
    %cst = arith.constant dense<0.000000e+00> : vector<8x32xf32>
    %8 = tpu.matmul %6, %7, %cst {dimension_numbers = #tpu.dot_dimension_numbers<[1], [0], [0], [1], [0, 0, 1, 1], [], []>} : vector<8x32xf32>, vector<32x32xf32>, vector<8x32xf32> -> vector<8x32xf32>
    %c0_6 = arith.constant 0 : index
    %c0_7 = arith.constant 0 : index
    %9 = vector.load %arg5[%c0_6, %c0_7] : memref<1x32xf32, #tpu.memory_space<vmem>>, vector<1x32xf32>
    %10 = vector.broadcast %9 : vector<1x32xf32> to vector<8x32xf32>
    %11 = arith.addf %8, %10 : vector<8x32xf32>
    %cst_8 = arith.constant 0.000000e+00 : f32
    %12 = vector.broadcast %cst_8 : f32 to vector<8x32xf32>
    %13 = arith.maximumf %11, %12 : vector<8x32xf32>
    %c0_9 = arith.constant 0 : index
    %c0_10 = arith.constant 0 : index
    %14 = vector.load %arg6[%c0_9, %c0_10] : memref<32x32xf32, #tpu.memory_space<vmem>>, vector<32x32xf32>
    %cst_11 = arith.constant dense<0.000000e+00> : vector<8x32xf32>
    %15 = tpu.matmul %13, %14, %cst_11 {dimension_numbers = #tpu.dot_dimension_numbers<[1], [0], [0], [1], [0, 0, 1, 1], [], []>} : vector<8x32xf32>, vector<32x32xf32>, vector<8x32xf32> -> vector<8x32xf32>
    %c0_12 = arith.constant 0 : index
    %c0_13 = arith.constant 0 : index
    %16 = vector.load %arg7[%c0_12, %c0_13] : memref<1x32xf32, #tpu.memory_space<vmem>>, vector<1x32xf32>
    %17 = vector.broadcast %16 : vector<1x32xf32> to vector<8x32xf32>
    %18 = arith.addf %15, %17 : vector<8x32xf32>
    %cst_14 = arith.constant 0.000000e+00 : f32
    %19 = vector.broadcast %cst_14 : f32 to vector<8x32xf32>
    %20 = arith.maximumf %18, %19 : vector<8x32xf32>
    %c0_15 = arith.constant 0 : index
    %c0_16 = arith.constant 0 : index
    %21 = vector.load %arg8[%c0_15, %c0_16] : memref<1x32xf32, #tpu.memory_space<vmem>>, vector<1x32xf32>
    %22 = vector.broadcast %21 : vector<1x32xf32> to vector<8x32xf32>
    %23 = arith.mulf %20, %22 : vector<8x32xf32>
    %cst_17 = arith.constant dense<0.000000e+00> : vector<8xf32>
    %24 = vector.multi_reduction <add>, %23, %cst_17 [1] : vector<8x32xf32> to vector<8xf32>
    %25 = vector.shape_cast %24 : vector<8xf32> to vector<8x1xf32>
    %c0_18 = arith.constant 0 : index
    %c0_19 = arith.constant 0 : index
    %26 = vector.load %arg9[%c0_18, %c0_19] : memref<1x1xf32, #tpu.memory_space<vmem>>, vector<1x1xf32>
    %27 = vector.broadcast %26 : vector<1x1xf32> to vector<8x1xf32>
    %28 = arith.addf %25, %27 : vector<8x1xf32>
    %cst_20 = arith.constant 2.000000e+01 : f32
    %29 = vector.broadcast %cst_20 : f32 to vector<8x1xf32>
    %30 = arith.cmpf ogt, %28, %29 : vector<8x1xf32>
    %cst_21 = arith.constant 2.000000e+01 : f32
    %31 = vector.broadcast %cst_21 : f32 to vector<8x1xf32>
    %32 = arith.minimumf %28, %31 : vector<8x1xf32>
    %33 = math.exp %32 : vector<8x1xf32>
    %34 = math.log1p %33 : vector<8x1xf32>
    %35 = arith.select %30, %28, %34 : vector<8x1xi1>, vector<8x1xf32>
    %c0_22 = arith.constant 0 : index
    %c0_23 = arith.constant 0 : index
    %36 = vector.load %arg11[%c0_22, %c0_23] : memref<1x1xf32, #tpu.memory_space<vmem>>, vector<1x1xf32>
    %37 = vector.shape_cast %35 : vector<8x1xf32> to vector<1x8x1xf32>
    %cst_24 = arith.constant dense<0.000000e+00> : vector<1xf32>
    %38 = vector.multi_reduction <add>, %37, %cst_24 [1, 2] : vector<1x8x1xf32> to vector<1xf32>
    %39 = vector.shape_cast %38 : vector<1xf32> to vector<1x1x1xf32>
    %40 = vector.extract %39[0, 0, 0] : f32 from vector<1x1x1xf32>
    %41 = vector.broadcast %40 : f32 to vector<1x1xf32>
    %42 = arith.addf %36, %41 : vector<1x1xf32>
    %c0_25 = arith.constant 0 : index
    %c0_26 = arith.constant 0 : index
    %43 = vector.load %arg11[%c0_25, %c0_26] : memref<1x1xf32, #tpu.memory_space<vmem>>, vector<1x1xf32>
    tpu.vector_store %arg11[%c0_25, %c0_26], %42 {strides = array<i32>} : memref<1x1xf32, #tpu.memory_space<vmem>>, vector<1x1xf32>,
    %c0_i32_27 = arith.constant 0 : i32
    %44 = arith.cmpi eq, %arg1, %c0_i32_27 : i32
    %45 = arith.extui %44 : i1 to i32
    %c0_i32_28 = arith.constant 0 : i32
    %46 = arith.cmpi ne, %45, %c0_i32_28 : i32
    scf.if %46 {
      %c0_29 = arith.constant 0 : index
      %c0_30 = arith.constant 0 : index
      %47 = vector.load %arg11[%c0_29, %c0_30] : memref<1x1xf32, #tpu.memory_space<vmem>>, vector<1x1xf32>
      %c0_31 = arith.constant 0 : index
      %c0_32 = arith.constant 0 : index
      %c0_33 = arith.constant 0 : index
      %48 = vector.load %arg10[%c0_31, %c0_32, %c0_33] : memref<1x1x1xf32, #tpu.memory_space<vmem>>, vector<1x1x1xf32>
      %49 = vector.shape_cast %48 : vector<1x1x1xf32> to vector<1x1xf32>
      %50 = vector.shape_cast %47 : vector<1x1xf32> to vector<1x1x1xf32>
      tpu.vector_store %arg10[%c0_31, %c0_32, %c0_33], %50 {strides = array<i32>} : memref<1x1x1xf32, #tpu.memory_space<vmem>>, vector<1x1x1xf32>,
    } else {
    }
    return
  }
  func.func @transform_0(%arg0: i32, %arg1: i32) -> (i32, i32) {
    %c1_i32 = arith.constant 1 : i32
    %0 = arith.muli %arg0, %c1_i32 : i32
    %1 = arith.addi %0, %arg1 : i32
    %c0_i32 = arith.constant 0 : i32
    %2 = arith.minsi %1, %c0_i32 : i32
    %c0_i32_0 = arith.constant 0 : i32
    %c0_i32_1 = arith.constant 0 : i32
    return %2, %c0_i32_0 : i32, i32
  }
  func.func @transform_1(%arg0: i32, %arg1: i32) -> (i32, i32) {
    %c1_i32 = arith.constant 1 : i32
    %0 = arith.muli %arg0, %c1_i32 : i32
    %1 = arith.addi %0, %arg1 : i32
    %c0_i32 = arith.constant 0 : i32
    %2 = arith.minsi %1, %c0_i32 : i32
    %c0_i32_0 = arith.constant 0 : i32
    %c0_i32_1 = arith.constant 0 : i32
    return %2, %c0_i32_0 : i32, i32
  }
  func.func @transform_2(%arg0: i32, %arg1: i32) -> (i32, i32) {
    %c0_i32 = arith.constant 0 : i32
    %c0_i32_0 = arith.constant 0 : i32
    %c0_i32_1 = arith.constant 0 : i32
    return %c0_i32, %c0_i32_0 : i32, i32
  }
  func.func @transform_3(%arg0: i32, %arg1: i32) -> (i32, i32) {
    %c0_i32 = arith.constant 0 : i32
    %c0_i32_0 = arith.constant 0 : i32
    %c0_i32_1 = arith.constant 0 : i32
    return %c0_i32, %c0_i32_0 : i32, i32
  }
  func.func @transform_4(%arg0: i32, %arg1: i32) -> (i32, i32) {
    %c0_i32 = arith.constant 0 : i32
    %c0_i32_0 = arith.constant 0 : i32
    %c0_i32_1 = arith.constant 0 : i32
    return %c0_i32, %c0_i32_0 : i32, i32
  }
  func.func @transform_5(%arg0: i32, %arg1: i32) -> (i32, i32) {
    %c0_i32 = arith.constant 0 : i32
    %c0_i32_0 = arith.constant 0 : i32
    %c0_i32_1 = arith.constant 0 : i32
    return %c0_i32, %c0_i32_0 : i32, i32
  }
  func.func @transform_6(%arg0: i32, %arg1: i32) -> (i32, i32) {
    %c0_i32 = arith.constant 0 : i32
    %c0_i32_0 = arith.constant 0 : i32
    %c0_i32_1 = arith.constant 0 : i32
    return %c0_i32, %c0_i32_0 : i32, i32
  }
  func.func @transform_7(%arg0: i32, %arg1: i32) -> (i32, i32) {
    %c0_i32 = arith.constant 0 : i32
    %c0_i32_0 = arith.constant 0 : i32
    %c0_i32_1 = arith.constant 0 : i32
    return %c0_i32, %c0_i32_0 : i32, i32
  }
  func.func @transform_8(%arg0: i32, %arg1: i32) -> (i32, i32, i32) {
    %c0_i32 = arith.constant 0 : i32
    %c0_i32_0 = arith.constant 0 : i32
    %c0_i32_1 = arith.constant 0 : i32
    return %arg0, %c0_i32, %c0_i32_0 : i32, i32, i32
  }
}

</mosaic_0001>

<llo_original>
// kernel: ml3_smnist_forward.1
$region0: #{ml3_smnist_forward.1}
  #allocation0 [shape = 'u32[]', space=smem, size = 0x4, offset = 0x4, fixed_abs, tag = 'smem constant byte address 0x4 - core index']
  #allocation1 [shape = 'u32[144,128]{1,0:T(1,128)}', space=vmem, size = 0x12000, scoped, tag = 'internal scratch']
  #allocation2 [shape = 'f32[1,1]{1,0:T(1,128)}', space=vmem, size = 0x200, scoped, tag = 'scratch operand']
  #allocation3 [shape = 'f32[1,1]{1,0:T(1,128)S(1)}', space=vmem, size = 0x200, scoped, tag = 'scoped memory for ml3_smnist_forward.1']
  %s0 = inlined_call_operand.vmem [shape: f32[8,32], index: 0, kind: input, shape index: {}]
  %s1 = inlined_call_operand.vmem [shape: f32[8,32], index: 1, kind: input, shape index: {}]
  %s2 = inlined_call_operand.vmem [shape: f32[32,32], index: 2, kind: input, shape index: {}]
  %s3 = inlined_call_operand.vmem [shape: f32[1,32], index: 3, kind: input, shape index: {}]
  %s4 = inlined_call_operand.vmem [shape: f32[32,32], index: 4, kind: input, shape index: {}]
  %s5 = inlined_call_operand.vmem [shape: f32[1,32], index: 5, kind: input, shape index: {}]
  %s6 = inlined_call_operand.vmem [shape: f32[1,32], index: 6, kind: input, shape index: {}]
  %s7 = inlined_call_operand.<no memory space> [shape: f32[1,1], index: 7, kind: input, shape index: {}]
  %s8 = inlined_call_operand.hbm [shape: f32[1,1,1], index: 8, kind: output, shape index: {}]
  %s9 = sld [smem:[#allocation0]]
  $region50: #{ml3_smnist_forward.1} parent=0
    _
  %s11 = ssub.s32 1, %s9
  %s12 = scalar_select 0, %s11, %s9
  %v13 = vstv %s7
  %14 = vst [vmem:[#allocation3] sm:$0x1] %v13
  $region1: #{ml3_smnist_forward.1} parent=0
    #allocation4 [shape = 'u8[512]{0}', space=vmem, size = 0x400, scoped, tag = 'output window, operand 0, single buffered']
    #allocation5 [shape = 's32[1]{0}', space=sflag, size = 0x4, scoped, tag = 'scoped memory for ml3_smnist_forward.1']
    %15 = vsyncpa [#allocation5], 0
    // Predicated region
    $region2: #{ml3_smnist_forward.1} parent=1 // pred_check
      _
    $region3: #{ml3_smnist_forward.1} parent=1 // pred_check_branch
      %17 = sbr.rel (0) target = $region5
    $region4: #{ml3_smnist_forward.1} parent=1 // pred_region
      %s18 = sadd.s32 0, 0
      %p19 = scmp.lt.s32.totalorder %s18, 0
      %s20 = scalar_select %p19, %s18, 0
      %p21 = scmp.lt.s32.totalorder %s20, 0
      %s22 = scalar_select %p21, %s20, 0
      %s23 = smul.addr %s22, 8
      %s24 = scalar_lea.vmem %s0, %s23
      %s25 = sadd.s32 0, 0
      %p26 = scmp.lt.s32.totalorder %s25, 0
      %s27 = scalar_select %p26, %s25, 0
    $region5: #{ml3_smnist_forward.1} parent=1 // pred_fallthru
      _
    // Predicated region
    $region6: #{ml3_smnist_forward.1} parent=1 // pred_check
      _
    $region7: #{ml3_smnist_forward.1} parent=1 // pred_check_branch
      %29 = sbr.rel (0) target = $region9
    $region8: #{ml3_smnist_forward.1} parent=1 // pred_region
      %s30 = sadd.s32 0, 0
      %p31 = scmp.lt.s32.totalorder %s30, 0
      %s32 = scalar_select %p31, %s30, 0
      %p33 = scmp.lt.s32.totalorder %s32, 0
      %s34 = scalar_select %p33, %s32, 0
      %s35 = smul.addr %s34, 8
      %s36 = scalar_lea.vmem %s1, %s35
      %s37 = sadd.s32 0, 0
      %p38 = scmp.lt.s32.totalorder %s37, 0
      %s39 = scalar_select %p38, %s37, 0
    $region9: #{ml3_smnist_forward.1} parent=1 // pred_fallthru
      _
    // Predicated region
    $region10: #{ml3_smnist_forward.1} parent=1 // pred_check
      _
    $region11: #{ml3_smnist_forward.1} parent=1 // pred_check_branch
      %41 = sbr.rel (0) target = $region13
    $region12: #{ml3_smnist_forward.1} parent=1 // pred_region
      _
    $region13: #{ml3_smnist_forward.1} parent=1 // pred_fallthru
      _
    // Predicated region
    $region14: #{ml3_smnist_forward.1} parent=1 // pred_check
      _
    $region15: #{ml3_smnist_forward.1} parent=1 // pred_check_branch
      %43 = sbr.rel (0) target = $region17
    $region16: #{ml3_smnist_forward.1} parent=1 // pred_region
      _
    $region17: #{ml3_smnist_forward.1} parent=1 // pred_fallthru
      _
    // Predicated region
    $region18: #{ml3_smnist_forward.1} parent=1 // pred_check
      _
    $region19: #{ml3_smnist_forward.1} parent=1 // pred_check_branch
      %45 = sbr.rel (0) target = $region21
    $region20: #{ml3_smnist_forward.1} parent=1 // pred_region
      _
    $region21: #{ml3_smnist_forward.1} parent=1 // pred_fallthru
      _
    // Predicated region
    $region22: #{ml3_smnist_forward.1} parent=1 // pred_check
      _
    $region23: #{ml3_smnist_forward.1} parent=1 // pred_check_branch
      %47 = sbr.rel (0) target = $region25
    $region24: #{ml3_smnist_forward.1} parent=1 // pred_region
      _
    $region25: #{ml3_smnist_forward.1} parent=1 // pred_fallthru
      _
    // Predicated region
    $region26: #{ml3_smnist_forward.1} parent=1 // pred_check
      _
    $region27: #{ml3_smnist_forward.1} parent=1 // pred_check_branch
      %49 = sbr.rel (0) target = $region29
    $region28: #{ml3_smnist_forward.1} parent=1 // pred_region
      _
    $region29: #{ml3_smnist_forward.1} parent=1 // pred_fallthru
      _
    // Predicated region
    $region30: #{ml3_smnist_forward.1} parent=1 // pred_check
      _
    $region31: #{ml3_smnist_forward.1} parent=1 // pred_check_branch
      %51 = sbr.rel (0) target = $region33
    $region32: #{ml3_smnist_forward.1} parent=1 // pred_region
      _
    $region33: #{ml3_smnist_forward.1} parent=1 // pred_fallthru
      _
    %s52 = sadd.s32 0, 0
    %p53 = scmp.lt.s32.totalorder %s52, 0
    %s54 = scalar_select %p53, %s52, 0
    %p55 = scmp.lt.s32.totalorder %s54, 0
    %s56 = scalar_select %p55, %s54, 0
    %s57 = smul.addr %s56, 8
    %s58 = scalar_lea.vmem %s0, %s57
    %s59 = sadd.s32 0, 0
    %p60 = scmp.lt.s32.totalorder %s59, 0
    %s61 = scalar_select %p60, %s59, 0
    %p62 = scmp.lt.s32.totalorder %s61, 0
    %s63 = scalar_select %p62, %s61, 0
    %s64 = smul.addr %s63, 8
    %s65 = scalar_lea.vmem %s1, %s64
    %s66 = sadd.s32 0, 0
    %p67 = scmp.lt.s32.totalorder %s66, 0
    %s68 = scalar_select %p67, %s66, 0
    %p69 = scmp.lt.s32.totalorder %s68, 0
    %s70 = scalar_select %p69, %s68, 0
    %s71 = smul.addr %s70, 8
    %s72 = scalar_lea.vmem %s0, %s71
    %s73 = sadd.s32 0, 0
    %p74 = scmp.lt.s32.totalorder %s73, 0
    %s75 = scalar_select %p74, %s73, 0
    %s76 = sadd.s32 0, 0
    %p77 = scmp.lt.s32.totalorder %s76, 0
    %s78 = scalar_select %p77, %s76, 0
    %p79 = scmp.lt.s32.totalorder %s78, 0
    %s80 = scalar_select %p79, %s78, 0
    %s81 = smul.addr %s80, 8
    %s82 = scalar_lea.vmem %s1, %s81
    %s83 = sadd.s32 0, 0
    %p84 = scmp.lt.s32.totalorder %s83, 0
    %s85 = scalar_select %p84, %s83, 0
    %p86 = scmp.eq.s32.totalorder 0, 0
    // Predicated region
    $region34: #{ml3_smnist_forward.1} parent=1 // pred_check
      %p87 = pneg %p86
    $region35: #{ml3_smnist_forward.1} parent=1 // pred_check_branch
      %89 = sbr.rel (%p87) target = $region37
    $region36: #{ml3_smnist_forward.1} parent=1 // pred_region
      %vm90 = vcmask 0
      %91 = vst.msk [vmem:[#allocation2] sm:$0x1] %vm90, 0.0
    $region37: #{ml3_smnist_forward.1} parent=1 // pred_fallthru
      _
    %v92 = vld [vmem:[%s72] sm:$0xff]
    %v93 = vld [vmem:[%s82] sm:$0xff]
    %v94 = vsub.f32 %v92, %v93
    %v95 = vand.u32 2147483647, %v94
    %v96 = vld [vmem:[%s2] sm:$0xff]
    %v97 = vld [vmem:[%s2 + $0x8] sm:$0xff]
    %v98 = vld [vmem:[%s2 + $0x10] sm:$0xff]
    %v99 = vld [vmem:[%s2 + $0x18] sm:$0xff]
    %v100 = vld [vmem:[%s3] sm:$0x1]
    %v102 = vlaneseq
    %v103 = vshrl.u32 %v102, 7
    %v104 = vsub.s32 0, %v103
    %v105 = vrot.slane %v100, %v104
    %vm107 = vcmask 261120
    %v109 = vsel %vm107, %v95, 0
    %111 = vmatprep.subr.mxu0 0.0
    %112 = vmatpush1.msra.mxu0 0.0
    %113 = vmatprep.subr.mxu0 0.0
    %114 = vmatpush1.msra.mxu0 0.0
    %115 = vmatprep.subr.mxu0 0.0
    %116 = vmatpush1.msra.mxu0 0.0
    %117 = vmatprep.subr.mxu0 0.0
    %118 = vmatpush1.msra.mxu0 0.0
    %119 = vmatprep.subr.mxu0 0.0
    %120 = vmatpush1.msra.mxu0 0.0
    %121 = vmatprep.subr.mxu0 0.0
    %122 = vmatpush1.msra.mxu0 0.0
    %123 = vmatprep.subr.mxu0 0.0
    %124 = vmatpush1.msra.mxu0 0.0
    %125 = vmatprep.subr.mxu0 0.0
    %126 = vmatpush1.msra.mxu0 0.0
    %127 = vmatprep.subr.mxu0 0.0
    %128 = vmatpush1.msra.mxu0 0.0
    %129 = vmatprep.subr.mxu0 0.0
    %130 = vmatpush1.msra.mxu0 0.0
    %131 = vmatprep.subr.mxu0 0.0
    %132 = vmatpush1.msra.mxu0 0.0
    %133 = vmatprep.subr.mxu0 0.0
    %134 = vmatpush1.msra.mxu0 0.0
    %135 = vmatprep.subr.mxu0 0.0
    %136 = vmatpush1.msra.mxu0 %v99
    %137 = vmatprep.subr.mxu0 0.0
    %138 = vmatpush1.msra.mxu0 %v98
    %139 = vmatprep.subr.mxu0 0.0
    %140 = vmatpush1.msra.mxu0 %v97
    %141 = vmatprep.subr.mxu0 0.0
    %142 = vmatpush1.msra.mxu0 %v96
    %143 = vmatprep.subr.mxu0 0.0
    %144 = vmatpush2.msra.mxu0 0.0
    %145 = vmatprep.subr.mxu0 0.0
    %146 = vmatpush2.msra.mxu0 0.0
    %147 = vmatprep.subr.mxu0 0.0
    %148 = vmatpush2.msra.mxu0 0.0
    %149 = vmatprep.subr.mxu0 0.0
    %150 = vmatpush2.msra.mxu0 0.0
    %151 = vmatprep.subr.mxu0 0.0
    %152 = vmatpush2.msra.mxu0 0.0
    %153 = vmatprep.subr.mxu0 0.0
    %154 = vmatpush2.msra.mxu0 0.0
    %155 = vmatprep.subr.mxu0 0.0
    %156 = vmatpush2.msra.mxu0 0.0
    %157 = vmatprep.subr.mxu0 0.0
    %158 = vmatpush2.msra.mxu0 0.0
    %159 = vmatprep.subr.mxu0 0.0
    %160 = vmatpush2.msra.mxu0 0.0
    %161 = vmatprep.subr.mxu0 0.0
    %162 = vmatpush2.msra.mxu0 0.0
    %163 = vmatprep.subr.mxu0 0.0
    %164 = vmatpush2.msra.mxu0 0.0
    %165 = vmatprep.subr.mxu0 0.0
    %166 = vmatpush2.msra.mxu0 0.0
    %167 = vmatprep.subr.mxu0 0.0
    %168 = vmatpush2.msra.mxu0 0.0
    %169 = vmatprep.subr.mxu0 0.0
    %170 = vmatpush2.msra.mxu0 0.0
    %171 = vmatprep.subr.mxu0 0.0
    %172 = vmatpush2.msra.mxu0 0.0
    %173 = vmatprep.subr.mxu0 0.0
    %174 = vmatpush2.msra.mxu0 0.0
    %175 = vmatprep.mubr.f32.mxu0 0.0
    %176 = vmatmul.mubr.f32.gmra.mxu0 %v109
    %v177 = vpop.f32.mrf.mxu0
    %v178 = vadd.f32 %v105, %v177
    %v179 = vpop.f32.mrf.mxu0
    %180 = vdwg.mxu0
    %v181 = vmax.f32 %v178, 0.0
    %v182 = vld [vmem:[%s4] sm:$0xff]
    %v183 = vld [vmem:[%s4 + $0x8] sm:$0xff]
    %v184 = vld [vmem:[%s4 + $0x10] sm:$0xff]
    %v185 = vld [vmem:[%s4 + $0x18] sm:$0xff]
    %v186 = vld [vmem:[%s5] sm:$0x1]
    %v188 = vlaneseq
    %v189 = vshrl.u32 %v188, 7
    %v190 = vsub.s32 0, %v189
    %v191 = vrot.slane %v186, %v190
    %v194 = vsel %vm107, %v181, 0
    %196 = vmatprep.subr.mxu0 0.0
    %197 = vmatpush1.msra.mxu0 0.0
    %198 = vmatprep.subr.mxu0 0.0
    %199 = vmatpush1.msra.mxu0 0.0
    %200 = vmatprep.subr.mxu0 0.0
    %201 = vmatpush1.msra.mxu0 0.0
    %202 = vmatprep.subr.mxu0 0.0
    %203 = vmatpush1.msra.mxu0 0.0
    %204 = vmatprep.subr.mxu0 0.0
    %205 = vmatpush1.msra.mxu0 0.0
    %206 = vmatprep.subr.mxu0 0.0
    %207 = vmatpush1.msra.mxu0 0.0
    %208 = vmatprep.subr.mxu0 0.0
    %209 = vmatpush1.msra.mxu0 0.0
    %210 = vmatprep.subr.mxu0 0.0
    %211 = vmatpush1.msra.mxu0 0.0
    %212 = vmatprep.subr.mxu0 0.0
    %213 = vmatpush1.msra.mxu0 0.0
    %214 = vmatprep.subr.mxu0 0.0
    %215 = vmatpush1.msra.mxu0 0.0
    %216 = vmatprep.subr.mxu0 0.0
    %217 = vmatpush1.msra.mxu0 0.0
    %218 = vmatprep.subr.mxu0 0.0
    %219 = vmatpush1.msra.mxu0 0.0
    %220 = vmatprep.subr.mxu0 0.0
    %221 = vmatpush1.msra.mxu0 %v185
    %222 = vmatprep.subr.mxu0 0.0
    %223 = vmatpush1.msra.mxu0 %v184
    %224 = vmatprep.subr.mxu0 0.0
    %225 = vmatpush1.msra.mxu0 %v183
    %226 = vmatprep.subr.mxu0 0.0
    %227 = vmatpush1.msra.mxu0 %v182
    %228 = vmatprep.subr.mxu0 0.0
    %229 = vmatpush2.msra.mxu0 0.0
    %230 = vmatprep.subr.mxu0 0.0
    %231 = vmatpush2.msra.mxu0 0.0
    %232 = vmatprep.subr.mxu0 0.0
    %233 = vmatpush2.msra.mxu0 0.0
    %234 = vmatprep.subr.mxu0 0.0
    %235 = vmatpush2.msra.mxu0 0.0
    %236 = vmatprep.subr.mxu0 0.0
    %237 = vmatpush2.msra.mxu0 0.0
    %238 = vmatprep.subr.mxu0 0.0
    %239 = vmatpush2.msra.mxu0 0.0
    %240 = vmatprep.subr.mxu0 0.0
    %241 = vmatpush2.msra.mxu0 0.0
    %242 = vmatprep.subr.mxu0 0.0
    %243 = vmatpush2.msra.mxu0 0.0
    %244 = vmatprep.subr.mxu0 0.0
    %245 = vmatpush2.msra.mxu0 0.0
    %246 = vmatprep.subr.mxu0 0.0
    %247 = vmatpush2.msra.mxu0 0.0
    %248 = vmatprep.subr.mxu0 0.0
    %249 = vmatpush2.msra.mxu0 0.0
    %250 = vmatprep.subr.mxu0 0.0
    %251 = vmatpush2.msra.mxu0 0.0
    %252 = vmatprep.subr.mxu0 0.0
    %253 = vmatpush2.msra.mxu0 0.0
    %254 = vmatprep.subr.mxu0 0.0
    %255 = vmatpush2.msra.mxu0 0.0
    %256 = vmatprep.subr.mxu0 0.0
    %257 = vmatpush2.msra.mxu0 0.0
    %258 = vmatprep.subr.mxu0 0.0
    %259 = vmatpush2.msra.mxu0 0.0
    %260 = vmatprep.mubr.f32.mxu0 0.0
    %261 = vmatmul.mubr.f32.gmra.mxu0 %v194
    %v262 = vpop.f32.mrf.mxu0
    %v263 = vadd.f32 %v191, %v262
    %v264 = vpop.f32.mrf.mxu0
    %265 = vdwg.mxu0
    %v266 = vmax.f32 %v263, 0.0
    %v267 = vld [vmem:[%s6] sm:$0x1]
    %v269 = vlaneseq
    %v270 = vshrl.u32 %v269, 7
    %v271 = vsub.s32 0, %v270
    %v272 = vrot.slane %v267, %v271
    %v274 = vmul.f32 %v266, %v272
    %v275 = vsel %vm107, %v274, 0.0
    %276 = vadd.xlane.f32.xlu0 %v275
    %v277 = vpop.xlane.xlu0 %276
    %v278 = vld [vmem:[#allocation3] sm:$0x1]
    %v280 = vlaneseq
    %v281 = vshrl.u32 %v280, 7
    %v282 = vsub.s32 0, %v281
    %v283 = vrot.slane %v278, %v282
    %v285 = vadd.f32 %v277, %v283
    %vm286 = vcmp.gt.f32.partialorder %v285, 20.0
    %v287 = vmin.f32 %v285, 20.0
    %v288 = vmul.f32 %v287, 1.442695
    %v289 = vpow.pop %v288
    %v290 = vadd.f32 %v289, 1.0
    %v291 = vlog2.pop %v290
    %v292 = vmul.f32 %v291, 0.6931472
    %v293 = vmul.f32 -0.5, %v289
    %v294 = vadd.f32 %v293, 1.0
    %v295 = vmul.f32 %v294, %v289
    %v296 = vand.u32 2147483647, %v289
    %vm297 = vcmp.lt.f32.partialorder %v296, 0.0004427343
    %v298 = vsel %vm297, %v295, %v292
    %v299 = vsel %vm286, %v285, %v298
    %v300 = vld [vmem:[#allocation2] sm:$0x1]
    %vm301 = vcmask 7168
    %v302 = vsel %vm301, %v299, 0.0
    %303 = vadd.xlane.f32.xlu0 %v302
    %v304 = vpop.xlane.xlu0 %303
    %v305 = vrot.slane %v304, 4
    %v306 = vadd.f32 %v304, %v305
    %v307 = vrot.slane %v306, 2
    %v308 = vadd.f32 %v306, %v307
    %v309 = vrot.slane %v308, 1
    %v310 = vadd.f32 %v308, %v309
    %s311 = vtos %v310
    %v312 = vstv %s311
    %v313 = vadd.f32 %v300, %v312
    %vm314 = vcmask 0
    %315 = vst.msk [vmem:[#allocation2] sm:$0x1] %vm314, %v313
    // Predicated region
    $region38: #{ml3_smnist_forward.1} parent=1 // pred_check
      %p316 = pneg %p86
    $region39: #{ml3_smnist_forward.1} parent=1 // pred_check_branch
      %318 = sbr.rel (%p316) target = $region41
    $region40: #{ml3_smnist_forward.1} parent=1 // pred_region
      %v319 = vld [vmem:[#allocation2] sm:$0x1]
      %320 = vst.msk [vmem:[#allocation4] sm:$0x1] %vm314, %v319
    $region41: #{ml3_smnist_forward.1} parent=1 // pred_fallthru
      _
    // Predicated region
    $region42: #{ml3_smnist_forward.1} parent=1 // pred_check
      _
    $region43: #{ml3_smnist_forward.1} parent=1 // pred_check_branch
      %322 = sbr.rel (0) target = $region45
    $region44: #{ml3_smnist_forward.1} parent=1 // pred_region
      %s324 = ssub.s32 16, 16
      %325 = vsyncadd [#allocation5], %s324
      %s327 = sshll.u32 [#allocation4], 4
      %s328 = int_to_ptr.vmem [resolvable:$true] %s327
      %330 = dma.vmem_to_hbm [thread:$0]  %s328, 16, %s8, [#allocation5]
    $region45: #{ml3_smnist_forward.1} parent=1 // pred_fallthru
      _
    // Predicated region
    $region46: #{ml3_smnist_forward.1} parent=1 // pred_check
      _
    $region47: #{ml3_smnist_forward.1} parent=1 // pred_check_branch
      %332 = sbr.rel (0) target = $region49
    $region48: #{ml3_smnist_forward.1} parent=1 // pred_region
      %333 = dma.done [#allocation5], 16
    $region49: #{ml3_smnist_forward.1} parent=1 // pred_fallthru
      _
    %334 = vsyncpa [#allocation5], 1

</llo_original>
